<compile_context>
chip_gen: v7x
topology: tpu7x:2x2x1
jax: 0.10.0
libtpu: 0.0.40
codegen_flags: <defaults>
</compile_context>

<pallas_src>
import jax
import jax.numpy as jnp
from jax.experimental import pallas as pl
from jax.experimental.pallas import tpu as pltpu


def _round_up(x, m):
    return (x + m - 1) // m * m


def _pick_hidden_tile(h_pad, max_tile):
    for cand in (512, 256, 128):
        if cand <= max_tile and h_pad % cand == 0:
            return cand
    return 128


def mlp_kernel(x_ref, w1_ref, b1_ref, w2_ref, b2_ref, o_ref, acc_ref):
    kh = pl.program_id(1)

    @pl.when(kh == 0)
    def _init():
        # Fold the output bias into the accumulator init.
        acc_ref[...] = jnp.broadcast_to(
            b2_ref[...].astype(jnp.float32), acc_ref.shape)

    # hidden chunk: relu(x @ W1[:, kh] + b1[kh])   (bf16 in, f32 accumulate)
    h = jnp.dot(x_ref[...], w1_ref[...], preferred_element_type=jnp.float32)
    h = jnp.maximum(h + b1_ref[...].astype(jnp.float32), 0.0)

    # accumulate this hidden chunk's contribution to the output.
    acc_ref[...] += jnp.dot(h.astype(w2_ref.dtype), w2_ref[...],
                            preferred_element_type=jnp.float32)

    @pl.when(kh == pl.num_programs(1) - 1)
    def _finalize():
        o_ref[...] = acc_ref[...].astype(o_ref.dtype)


def mlp_forward(x, w1, b1, w2, b2, *, block_m=256, block_h=512):
    """Fused MLP forward: relu(x @ w1 + b1) @ w2 + b2.

    x : (B, D);  w1 : (D, H);  b1 : (H,) or (1, H);  w2 : (H, D);  b2 : (D,) or (1, D)
    Weights are stored pre-transposed relative to PyTorch's (out, in) layout.
    """
    B, D = x.shape
    H = w1.shape[1]
    out_dtype = x.dtype

    b1 = jnp.reshape(b1, (1, -1)).astype(jnp.float32)
    b2 = jnp.reshape(b2, (1, -1)).astype(jnp.float32)

    # Lane-dense padding: multiples of 128 on feature axes, 8 on batch.
    d_pad = _round_up(D, 128)
    h_pad = _round_up(H, 128)
    tm = block_m if B >= block_m else _round_up(B, 8)
    b_pad = _round_up(B, tm)
    th = _pick_hidden_tile(h_pad, block_h)

    xp = jnp.pad(x, ((0, b_pad - B), (0, d_pad - D))).astype(jnp.bfloat16)
    w1p = jnp.pad(w1, ((0, d_pad - D), (0, h_pad - H))).astype(jnp.bfloat16)
    w2p = jnp.pad(w2, ((0, h_pad - H), (0, d_pad - D))).astype(jnp.bfloat16)
    b1p = jnp.pad(b1, ((0, 0), (0, h_pad - H)))
    b2p = jnp.pad(b2, ((0, 0), (0, d_pad - D)))

    grid = (b_pad // tm, h_pad // th)

    cost = pl.CostEstimate(
        flops=int(2 * b_pad * d_pad * h_pad * 2),          # two matmuls
        transcendentals=0,
        bytes_accessed=int(xp.size * 2 + w1p.size * 2 + w2p.size * 2 +
                           b1p.size * 4 + b2p.size * 4 + b_pad * d_pad * 4),
    )

    out_padded = pl.pallas_call(
        mlp_kernel,
        out_shape=jax.ShapeDtypeStruct((b_pad, d_pad), out_dtype),
        grid_spec=pltpu.PrefetchScalarGridSpec(
            num_scalar_prefetch=0,
            grid=grid,
            in_specs=[
                pl.BlockSpec((tm, d_pad), lambda i, k: (i, 0)),   # x tile (k-invariant)
                pl.BlockSpec((d_pad, th), lambda i, k: (0, k)),   # W1 chunk
                pl.BlockSpec((1, th),     lambda i, k: (0, k)),   # b1 chunk
                pl.BlockSpec((th, d_pad), lambda i, k: (k, 0)),   # W2 chunk
                pl.BlockSpec((1, d_pad),  lambda i, k: (0, 0)),   # b2 (resident)
            ],
            out_specs=pl.BlockSpec((tm, d_pad), lambda i, k: (i, 0)),
            scratch_shapes=[pltpu.VMEM((tm, d_pad), jnp.float32)],
        ),
        compiler_params=pltpu.CompilerParams(
            dimension_semantics=("parallel", "arbitrary"),
            vmem_limit_bytes=48 * 1024 * 1024,   # fits v7x's 64 MiB with headroom
        ),
        cost_estimate=cost,
    )(xp, w1p, b1p, w2p, b2p)

    return out_padded[:B, :D]


def make_mlp_params(input_dim, hidden_dim, dtype=jnp.float32):
    """Deterministic init matching MLP.initialize_weights():
    nn.init.eye_ on both weight matrices, zeros for both biases.
    Weights are stored pre-transposed (in, out); the identity pattern is
    symmetric under transpose."""
    w1 = jnp.eye(input_dim, hidden_dim, dtype=dtype)     # (in, hidden)
    b1 = jnp.zeros((1, hidden_dim), dtype=dtype)
    w2 = jnp.eye(hidden_dim, input_dim, dtype=dtype)     # (hidden, in)
    b2 = jnp.zeros((1, input_dim), dtype=dtype)
    return w1, b1, w2, b2


def _reference(x, w1, b1, w2, b2):
    """Pure-JAX reference with the same bf16 operand rounding as the kernel."""
    f32 = jnp.float32
    xb = x.astype(jnp.bfloat16).astype(f32)
    w1b = w1.astype(jnp.bfloat16).astype(f32)
    w2b = w2.astype(jnp.bfloat16).astype(f32)
    h = jnp.maximum(xb @ w1b + jnp.reshape(b1, (1, -1)).astype(f32), 0.0)
    hb = h.astype(jnp.bfloat16).astype(f32)
    return hb @ w2b + jnp.reshape(b2, (1, -1)).astype(f32)


if __name__ == "__main__":
    # --- Test 1: the module's deterministic init (identity weights, zero bias) ---
    batch, input_dim, hidden_dim = 8, 16, 32
    key = jax.random.PRNGKey(0)
    x = jax.random.normal(key, (batch, input_dim), dtype=jnp.float32)
    w1, b1, w2, b2 = make_mlp_params(input_dim, hidden_dim)

    out = jax.block_until_ready(mlp_forward(x, w1, b1, w2, b2))
    ref = _reference(x, w1, b1, w2, b2)
    assert out.shape == (batch, input_dim)
    assert jnp.allclose(out, ref, atol=5e-3, rtol=5e-3)

    # --- Test 2: padded, multi-step hidden reduction with random weights ---
    batch2, d2, h2 = 24, 160, 600          # pads to 256 lanes, 640 hidden (5 k-steps)
    ks = jax.random.split(jax.random.PRNGKey(0), 5)
    x2 = jax.random.normal(ks[0], (batch2, d2), dtype=jnp.float32)
    w1r = 0.05 * jax.random.normal(ks[1], (d2, h2), dtype=jnp.float32)
    b1r = 0.05 * jax.random.normal(ks[2], (h2,), dtype=jnp.float32)
    w2r = 0.05 * jax.random.normal(ks[3], (h2, d2), dtype=jnp.float32)
    b2r = 0.05 * jax.random.normal(ks[4], (d2,), dtype=jnp.float32)

    out2 = jax.block_until_ready(mlp_forward(x2, w1r, b1r, w2r, b2r))
    ref2 = _reference(x2, w1r, b1r, w2r, b2r)
    assert out2.shape == (batch2, d2)
    assert jnp.allclose(out2, ref2, atol=2e-2, rtol=2e-2)

    print("KERNEL_OK")
</pallas_src>

<mosaic_0001>
module attributes {stable_mosaic.version = 11 : i64} {
  func.func @mlp_kernel(%arg0: i32, %arg1: i32, %arg2: memref<8x128xbf16, #tpu.memory_space<vmem>>, %arg3: memref<128x128xbf16, #tpu.memory_space<vmem>>, %arg4: memref<1x128xf32, #tpu.memory_space<vmem>>, %arg5: memref<128x128xbf16, #tpu.memory_space<vmem>>, %arg6: memref<1x128xf32, #tpu.memory_space<vmem>>, %arg7: memref<8x128xf32, #tpu.memory_space<vmem>>, %arg8: memref<8x128xf32, #tpu.memory_space<vmem>>) attributes {dimension_semantics = [#tpu.dimension_semantics<parallel>, #tpu.dimension_semantics<arbitrary>], iteration_bounds = array<i64: 1, 1>, scalar_prefetch = 0 : i64, scratch_operands = 1 : i64, tpu.core_type = #tpu.core_type<tc>, window_params = [{transform_indices = @transform_0, window_bounds = array<i64: 8, 128>}, {transform_indices = @transform_1, window_bounds = array<i64: 128, 128>}, {transform_indices = @transform_2, window_bounds = array<i64: 1, 128>}, {transform_indices = @transform_3, window_bounds = array<i64: 128, 128>}, {pipeline_mode = #tpu.pipeline_mode<synchronous>, transform_indices = @transform_4, window_bounds = array<i64: 1, 128>}, {transform_indices = @transform_5, window_bounds = array<i64: 8, 128>}]} {
    %c0_i32 = arith.constant 0 : i32
    %0 = arith.cmpi eq, %arg1, %c0_i32 : i32
    %1 = arith.extui %0 : i1 to i32
    %c0_i32_0 = arith.constant 0 : i32
    %2 = arith.cmpi ne, %1, %c0_i32_0 : i32
    scf.if %2 {
      %c0_16 = arith.constant 0 : index
      %c0_17 = arith.constant 0 : index
      %20 = vector.load %arg6[%c0_16, %c0_17] : memref<1x128xf32, #tpu.memory_space<vmem>>, vector<1x128xf32>
      %21 = vector.shape_cast %20 : vector<1x128xf32> to vector<1x128xf32>
      %22 = vector.broadcast %21 : vector<1x128xf32> to vector<8x128xf32>
      %c0_18 = arith.constant 0 : index
      %c0_19 = arith.constant 0 : index
      %23 = vector.load %arg8[%c0_18, %c0_19] : memref<8x128xf32, #tpu.memory_space<vmem>>, vector<8x128xf32>
      tpu.vector_store %arg8[%c0_18, %c0_19], %22 {strides = array<i32>} : memref<8x128xf32, #tpu.memory_space<vmem>>, vector<8x128xf32>,
    } else {
    }
    %c0 = arith.constant 0 : index
    %c0_1 = arith.constant 0 : index
    %3 = vector.load %arg2[%c0, %c0_1] : memref<8x128xbf16, #tpu.memory_space<vmem>>, vector<8x128xbf16>
    %c0_2 = arith.constant 0 : index
    %c0_3 = arith.constant 0 : index
    %4 = vector.load %arg3[%c0_2, %c0_3] : memref<128x128xbf16, #tpu.memory_space<vmem>>, vector<128x128xbf16>
    %cst = arith.constant dense<0.000000e+00> : vector<8x128xf32>
    %5 = tpu.matmul %3, %4, %cst {dimension_numbers = #tpu.dot_dimension_numbers<[1], [0], [0], [1], [0, 0, 1, 1], [], []>} : vector<8x128xbf16>, vector<128x128xbf16>, vector<8x128xf32> -> vector<8x128xf32>
    %c0_4 = arith.constant 0 : index
    %c0_5 = arith.constant 0 : index
    %6 = vector.load %arg4[%c0_4, %c0_5] : memref<1x128xf32, #tpu.memory_space<vmem>>, vector<1x128xf32>
    %7 = vector.broadcast %6 : vector<1x128xf32> to vector<8x128xf32>
    %8 = arith.addf %5, %7 : vector<8x128xf32>
    %cst_6 = arith.constant 0.000000e+00 : f32
    %9 = vector.broadcast %cst_6 : f32 to vector<8x128xf32>
    %10 = arith.maximumf %8, %9 : vector<8x128xf32>
    %c0_7 = arith.constant 0 : index
    %c0_8 = arith.constant 0 : index
    %11 = vector.load %arg8[%c0_7, %c0_8] : memref<8x128xf32, #tpu.memory_space<vmem>>, vector<8x128xf32>
    %12 = arith.truncf %10 : vector<8x128xf32> to vector<8x128xbf16>
    %c0_9 = arith.constant 0 : index
    %c0_10 = arith.constant 0 : index
    %13 = vector.load %arg5[%c0_9, %c0_10] : memref<128x128xbf16, #tpu.memory_space<vmem>>, vector<128x128xbf16>
    %cst_11 = arith.constant dense<0.000000e+00> : vector<8x128xf32>
    %14 = tpu.matmul %12, %13, %cst_11 {dimension_numbers = #tpu.dot_dimension_numbers<[1], [0], [0], [1], [0, 0, 1, 1], [], []>} : vector<8x128xbf16>, vector<128x128xbf16>, vector<8x128xf32> -> vector<8x128xf32>
    %15 = arith.addf %11, %14 : vector<8x128xf32>
    %c0_12 = arith.constant 0 : index
    %c0_13 = arith.constant 0 : index
    %16 = vector.load %arg8[%c0_12, %c0_13] : memref<8x128xf32, #tpu.memory_space<vmem>>, vector<8x128xf32>
    tpu.vector_store %arg8[%c0_12, %c0_13], %15 {strides = array<i32>} : memref<8x128xf32, #tpu.memory_space<vmem>>, vector<8x128xf32>,
    %c0_i32_14 = arith.constant 0 : i32
    %17 = arith.cmpi eq, %arg1, %c0_i32_14 : i32
    %18 = arith.extui %17 : i1 to i32
    %c0_i32_15 = arith.constant 0 : i32
    %19 = arith.cmpi ne, %18, %c0_i32_15 : i32
    scf.if %19 {
      %c0_16 = arith.constant 0 : index
      %c0_17 = arith.constant 0 : index
      %20 = vector.load %arg8[%c0_16, %c0_17] : memref<8x128xf32, #tpu.memory_space<vmem>>, vector<8x128xf32>
      %c0_18 = arith.constant 0 : index
      %c0_19 = arith.constant 0 : index
      %21 = vector.load %arg7[%c0_18, %c0_19] : memref<8x128xf32, #tpu.memory_space<vmem>>, vector<8x128xf32>
      tpu.vector_store %arg7[%c0_18, %c0_19], %20 {strides = array<i32>} : memref<8x128xf32, #tpu.memory_space<vmem>>, vector<8x128xf32>,
    } else {
    }
    return
  }
  func.func @transform_0(%arg0: i32, %arg1: i32) -> (i32, i32) {
    %c0_i32 = arith.constant 0 : i32
    %c0_i32_0 = arith.constant 0 : i32
    return %arg0, %c0_i32 : i32, i32
  }
  func.func @transform_1(%arg0: i32, %arg1: i32) -> (i32, i32) {
    %c0_i32 = arith.constant 0 : i32
    %c0_i32_0 = arith.constant 0 : i32
    return %c0_i32, %arg1 : i32, i32
  }
  func.func @transform_2(%arg0: i32, %arg1: i32) -> (i32, i32) {
    %c0_i32 = arith.constant 0 : i32
    %c0_i32_0 = arith.constant 0 : i32
    return %c0_i32, %arg1 : i32, i32
  }
  func.func @transform_3(%arg0: i32, %arg1: i32) -> (i32, i32) {
    %c0_i32 = arith.constant 0 : i32
    %c0_i32_0 = arith.constant 0 : i32
    return %arg1, %c0_i32 : i32, i32
  }
  func.func @transform_4(%arg0: i32, %arg1: i32) -> (i32, i32) {
    %c0_i32 = arith.constant 0 : i32
    %c0_i32_0 = arith.constant 0 : i32
    %c0_i32_1 = arith.constant 0 : i32
    return %c0_i32, %c0_i32_0 : i32, i32
  }
  func.func @transform_5(%arg0: i32, %arg1: i32) -> (i32, i32) {
    %c0_i32 = arith.constant 0 : i32
    %c0_i32_0 = arith.constant 0 : i32
    return %arg0, %c0_i32 : i32, i32
  }
}

</mosaic_0001>

<llo_original>
// kernel: tpu_custom_call.1
$region0: #{tpu_custom_call.1}
  #allocation0 [shape = 'u32[]', space=smem, size = 0x4, offset = 0x4, fixed_abs, tag = 'smem constant byte address 0x4 - core index']
  #allocation1 [shape = 'u32[144,128]{1,0:T(1,128)}', space=vmem, size = 0x12000, scoped, tag = 'internal scratch']
  #allocation2 [shape = 'f32[8,128]{1,0:T(8,128)}', space=vmem, size = 0x1000, scoped, tag = 'scratch operand']
  %s0 = inlined_call_operand.hbm [shape: bf16[8,128], index: 0, kind: input, shape index: {}]
  %s1 = inlined_call_operand.hbm [shape: bf16[128,128], index: 1, kind: input, shape index: {}]
  %s2 = inlined_call_operand.vmem [shape: f32[1,128], index: 2, kind: input, shape index: {}]
  %s3 = inlined_call_operand.hbm [shape: bf16[128,128], index: 3, kind: input, shape index: {}]
  %s4 = inlined_call_operand.vmem [shape: f32[1,128], index: 4, kind: input, shape index: {}]
  %s5 = inlined_call_operand.hbm [shape: f32[8,128], index: 5, kind: output, shape index: {}]
  %s6 = sld [smem:[#allocation0]]
  $region50: #{tpu_custom_call.1} parent=0
    _
  %s8 = ssub.s32 1, %s6
  %s9 = scalar_select 0, %s8, %s6
  $region1: #{tpu_custom_call.1} parent=0
    #allocation3 [shape = 'u8[2048]{0}', space=vmem, size = 0x800, scoped, tag = 'input window, operand 0, single buffered']
    #allocation4 [shape = 's32[1]{0}', space=sflag, size = 0x4, scoped, tag = 'scoped memory for tpu_custom_call.1']
    #allocation5 [shape = 's32[1]{0}', space=sflag, size = 0x4, scoped, tag = 'scoped memory for tpu_custom_call.1']
    #allocation6 [shape = 'u8[32768]{0}', space=vmem, size = 0x8000, scoped, tag = 'input window, operand 1, single buffered']
    #allocation7 [shape = 's32[1]{0}', space=sflag, size = 0x4, scoped, tag = 'scoped memory for tpu_custom_call.1']
    #allocation8 [shape = 'u8[32768]{0}', space=vmem, size = 0x8000, scoped, tag = 'input window, operand 3, single buffered']
    #allocation9 [shape = 'u8[4096]{0}', space=vmem, size = 0x1000, scoped, tag = 'output window, operand 0, single buffered']
    %10 = vsyncpa [#allocation4], 0
    %11 = vsyncpa [#allocation7], 0
    %12 = vsyncpa [#allocation5], 0
    // Predicated region
    $region2: #{tpu_custom_call.1} parent=1 // pred_check
      _
    $region3: #{tpu_custom_call.1} parent=1 // pred_check_branch
      %14 = sbr.rel (0) target = $region5
    $region4: #{tpu_custom_call.1} parent=1 // pred_region
      %s16 = ssub.s32 64, 64
      %17 = vsyncadd [#allocation4], %s16
      %s19 = sshll.u32 [#allocation3], 4
      %s20 = int_to_ptr.vmem [resolvable:$true] %s19
      %22 = dma.hbm_to_vmem [thread:$0]  %s0, 64, %s20, [#allocation4]
    $region5: #{tpu_custom_call.1} parent=1 // pred_fallthru
      _
    // Predicated region
    $region6: #{tpu_custom_call.1} parent=1 // pred_check
      _
    $region7: #{tpu_custom_call.1} parent=1 // pred_check_branch
      %24 = sbr.rel (0) target = $region9
    $region8: #{tpu_custom_call.1} parent=1 // pred_region
      %s26 = ssub.s32 1024, 1024
      %27 = vsyncadd [#allocation7], %s26
      %s28 = sshll.u32 [#allocation6], 4
      %s29 = int_to_ptr.vmem [resolvable:$true] %s28
      %34 = dma.hbm_to_vmem [thread:$0]  %s1, 1024, %s29, [#allocation7], 64, 64, 4
    $region9: #{tpu_custom_call.1} parent=1 // pred_fallthru
      _
    // Predicated region
    $region10: #{tpu_custom_call.1} parent=1 // pred_check
      _
    $region11: #{tpu_custom_call.1} parent=1 // pred_check_branch
      %36 = sbr.rel (0) target = $region13
    $region12: #{tpu_custom_call.1} parent=1 // pred_region
      _
    $region13: #{tpu_custom_call.1} parent=1 // pred_fallthru
      _
    // Predicated region
    $region14: #{tpu_custom_call.1} parent=1 // pred_check
      _
    $region15: #{tpu_custom_call.1} parent=1 // pred_check_branch
      %38 = sbr.rel (0) target = $region17
    $region16: #{tpu_custom_call.1} parent=1 // pred_region
      %s40 = ssub.s32 1024, 1024
      %41 = vsyncadd [#allocation7], %s40
      %s42 = sshll.u32 [#allocation8], 4
      %s43 = int_to_ptr.vmem [resolvable:$true] %s42
      %48 = dma.hbm_to_vmem [thread:$0]  %s3, 1024, %s43, [#allocation7], 64, 64, 4
    $region17: #{tpu_custom_call.1} parent=1 // pred_fallthru
      _
    // Predicated region
    $region18: #{tpu_custom_call.1} parent=1 // pred_check
      _
    $region19: #{tpu_custom_call.1} parent=1 // pred_check_branch
      %50 = sbr.rel (0) target = $region21
    $region20: #{tpu_custom_call.1} parent=1 // pred_region
      _
    $region21: #{tpu_custom_call.1} parent=1 // pred_fallthru
      _
    // Predicated region
    $region22: #{tpu_custom_call.1} parent=1 // pred_check
      _
    $region23: #{tpu_custom_call.1} parent=1 // pred_check_branch
      %52 = sbr.rel (0) target = $region25
    $region24: #{tpu_custom_call.1} parent=1 // pred_region
      %53 = dma.done [#allocation4], 64
    $region25: #{tpu_custom_call.1} parent=1 // pred_fallthru
      _
    // Predicated region
    $region26: #{tpu_custom_call.1} parent=1 // pred_check
      _
    $region27: #{tpu_custom_call.1} parent=1 // pred_check_branch
      %55 = sbr.rel (0) target = $region29
    $region28: #{tpu_custom_call.1} parent=1 // pred_region
      %56 = dma.done [#allocation7], 1024
    $region29: #{tpu_custom_call.1} parent=1 // pred_fallthru
      _
    // Predicated region
    $region30: #{tpu_custom_call.1} parent=1 // pred_check
      _
    $region31: #{tpu_custom_call.1} parent=1 // pred_check_branch
      %58 = sbr.rel (0) target = $region33
    $region32: #{tpu_custom_call.1} parent=1 // pred_region
      %59 = dma.done [#allocation7], 1024
    $region33: #{tpu_custom_call.1} parent=1 // pred_fallthru
      _
    %p61 = scmp.eq.s32.totalorder 0, 0
    // Predicated region
    $region34: #{tpu_custom_call.1} parent=1 // pred_check
      %p62 = pneg %p61
    $region35: #{tpu_custom_call.1} parent=1 // pred_check_branch
      %64 = sbr.rel (%p62) target = $region37
    $region36: #{tpu_custom_call.1} parent=1 // pred_region
      %v65 = vld [vmem:[%s4] sm:$0x1]
      %v67 = vlaneseq
      %v68 = vshrl.u32 %v67, 7
      %v69 = vsub.s32 0, %v68
      %v70 = vrot.slane %v65, %v69
      %72 = vst [vmem:[#allocation2] sm:$0xff] %v70
    $region37: #{tpu_custom_call.1} parent=1 // pred_fallthru
      _
    %v73 = vld [vmem:[#allocation3] sm:$0xf]
    %v74 = vld [vmem:[#allocation6] sm:$0xf]
    %v75 = vld [vmem:[#allocation6 + $0x4] sm:$0xf]
    %v76 = vld [vmem:[#allocation6 + $0x8] sm:$0xf]
    %v77 = vld [vmem:[#allocation6 + $0xc] sm:$0xf]
    %v78 = vld [vmem:[#allocation6 + $0x10] sm:$0xf]
    %v79 = vld [vmem:[#allocation6 + $0x14] sm:$0xf]
    %v80 = vld [vmem:[#allocation6 + $0x18] sm:$0xf]
    %v81 = vld [vmem:[#allocation6 + $0x1c] sm:$0xf]
    %v82 = vld [vmem:[#allocation6 + $0x20] sm:$0xf]
    %v83 = vld [vmem:[#allocation6 + $0x24] sm:$0xf]
    %v84 = vld [vmem:[#allocation6 + $0x28] sm:$0xf]
    %v85 = vld [vmem:[#allocation6 + $0x2c] sm:$0xf]
    %v86 = vld [vmem:[#allocation6 + $0x30] sm:$0xf]
    %v87 = vld [vmem:[#allocation6 + $0x34] sm:$0xf]
    %v88 = vld [vmem:[#allocation6 + $0x38] sm:$0xf]
    %v89 = vld [vmem:[#allocation6 + $0x3c] sm:$0xf]
    %v90 = vld [vmem:[%s2] sm:$0x1]
    %v92 = vlaneseq
    %v93 = vshrl.u32 %v92, 7
    %v94 = vsub.s32 0, %v93
    %v95 = vrot.slane %v90, %v94
    %v113 = vunpack.c.l.b16 %v74
    %v114 = vunpack.c.l.b16 %v75
    %v115 = vunpack.c.l.b16 %v76
    %v116 = vunpack.c.l.b16 %v77
    %v117 = vunpack.c.l.b16 %v78
    %v118 = vunpack.c.l.b16 %v79
    %v119 = vunpack.c.l.b16 %v80
    %v120 = vunpack.c.l.b16 %v81
    %v121 = vunpack.c.l.b16 %v82
    %v122 = vunpack.c.l.b16 %v83
    %v123 = vunpack.c.l.b16 %v84
    %v124 = vunpack.c.l.b16 %v85
    %v125 = vunpack.c.l.b16 %v86
    %v126 = vunpack.c.l.b16 %v87
    %v127 = vunpack.c.l.b16 %v88
    %v128 = vunpack.c.l.b16 %v89
    %v129 = vpack.c.b16 %v114, %v113
    %v130 = vpack.c.b16 %v116, %v115
    %v131 = vpack.c.b16 %v118, %v117
    %v132 = vpack.c.b16 %v120, %v119
    %v133 = vpack.c.b16 %v122, %v121
    %v134 = vpack.c.b16 %v124, %v123
    %v135 = vpack.c.b16 %v126, %v125
    %v136 = vpack.c.b16 %v128, %v127
    %145 = vmatprep.subr.bf16.mxu0 0
    %146 = vmatpush1.bf16.msra.mxu0 %v129
    %147 = vmatprep.subr.bf16.mxu0 0
    %148 = vmatpush1.bf16.msra.mxu0 %v130
    %149 = vmatprep.subr.bf16.mxu0 0
    %150 = vmatpush1.bf16.msra.mxu0 %v131
    %151 = vmatprep.subr.bf16.mxu0 0
    %152 = vmatpush1.bf16.msra.mxu0 %v132
    %153 = vmatprep.subr.bf16.mxu0 0
    %154 = vmatpush1.bf16.msra.mxu0 %v133
    %155 = vmatprep.subr.bf16.mxu0 0
    %156 = vmatpush1.bf16.msra.mxu0 %v134
    %157 = vmatprep.subr.bf16.mxu0 0
    %158 = vmatpush1.bf16.msra.mxu0 %v135
    %159 = vmatprep.subr.bf16.mxu0 0
    %160 = vmatpush1.bf16.msra.mxu0 %v136
    %161 = vmatprep.subr.bf16.mxu0 0
    %162 = vmatpush1.bf16.msra.mxu0 0
    %163 = vmatprep.subr.bf16.mxu0 0
    %164 = vmatpush1.bf16.msra.mxu0 0
    %165 = vmatprep.subr.bf16.mxu0 0
    %166 = vmatpush1.bf16.msra.mxu0 0
    %167 = vmatprep.subr.bf16.mxu0 0
    %168 = vmatpush1.bf16.msra.mxu0 0
    %169 = vmatprep.subr.bf16.mxu0 0
    %170 = vmatpush1.bf16.msra.mxu0 0
    %171 = vmatprep.subr.bf16.mxu0 0
    %172 = vmatpush1.bf16.msra.mxu0 0
    %173 = vmatprep.subr.bf16.mxu0 0
    %174 = vmatpush1.bf16.msra.mxu0 0
    %175 = vmatprep.subr.bf16.mxu0 0
    %176 = vmatpush1.bf16.msra.mxu0 0
    %177 = vmatprep.mubr.bf16.mxu0 0
    %178 = vmatmul.mubr.bf16.gmra.mrb[0].mxu0 %v73
    %v179 = vpop.f32.mrb[0].mxu0
    %v180 = vadd.f32 %v95, %v179
    %v181 = vpop.f32.mrb[0].mxu0
    %v182 = vpop.f32.mrb[0].mxu0
    %v183 = vpop.f32.mrb[0].mxu0
    %184 = vdwg.mxu0
    %v185 = vmax.f32 %v180, 0.0
    %v186 = vld [vmem:[#allocation2] sm:$0xff]
    %v187 = vpack.c.bf16 %v185, %v185
    %v188 = vld [vmem:[#allocation8] sm:$0xf]
    %v189 = vld [vmem:[#allocation8 + $0x4] sm:$0xf]
    %v190 = vld [vmem:[#allocation8 + $0x8] sm:$0xf]
    %v191 = vld [vmem:[#allocation8 + $0xc] sm:$0xf]
    %v192 = vld [vmem:[#allocation8 + $0x10] sm:$0xf]
    %v193 = vld [vmem:[#allocation8 + $0x14] sm:$0xf]
    %v194 = vld [vmem:[#allocation8 + $0x18] sm:$0xf]
    %v195 = vld [vmem:[#allocation8 + $0x1c] sm:$0xf]
    %v196 = vld [vmem:[#allocation8 + $0x20] sm:$0xf]
    %v197 = vld [vmem:[#allocation8 + $0x24] sm:$0xf]
    %v198 = vld [vmem:[#allocation8 + $0x28] sm:$0xf]
    %v199 = vld [vmem:[#allocation8 + $0x2c] sm:$0xf]
    %v200 = vld [vmem:[#allocation8 + $0x30] sm:$0xf]
    %v201 = vld [vmem:[#allocation8 + $0x34] sm:$0xf]
    %v202 = vld [vmem:[#allocation8 + $0x38] sm:$0xf]
    %v203 = vld [vmem:[#allocation8 + $0x3c] sm:$0xf]
    %v220 = vunpack.c.l.b16 %v188
    %v221 = vunpack.c.l.b16 %v189
    %v222 = vunpack.c.l.b16 %v190
    %v223 = vunpack.c.l.b16 %v191
    %v224 = vunpack.c.l.b16 %v192
    %v225 = vunpack.c.l.b16 %v193
    %v226 = vunpack.c.l.b16 %v194
    %v227 = vunpack.c.l.b16 %v195
    %v228 = vunpack.c.l.b16 %v196
    %v229 = vunpack.c.l.b16 %v197
    %v230 = vunpack.c.l.b16 %v198
    %v231 = vunpack.c.l.b16 %v199
    %v232 = vunpack.c.l.b16 %v200
    %v233 = vunpack.c.l.b16 %v201
    %v234 = vunpack.c.l.b16 %v202
    %v235 = vunpack.c.l.b16 %v203
    %v236 = vpack.c.b16 %v221, %v220
    %v237 = vpack.c.b16 %v223, %v222
    %v238 = vpack.c.b16 %v225, %v224
    %v239 = vpack.c.b16 %v227, %v226
    %v240 = vpack.c.b16 %v229, %v228
    %v241 = vpack.c.b16 %v231, %v230
    %v242 = vpack.c.b16 %v233, %v232
    %v243 = vpack.c.b16 %v235, %v234
    %252 = vmatprep.subr.bf16.mxu0 0
    %253 = vmatpush1.bf16.msra.mxu0 %v236
    %254 = vmatprep.subr.bf16.mxu0 0
    %255 = vmatpush1.bf16.msra.mxu0 %v237
    %256 = vmatprep.subr.bf16.mxu0 0
    %257 = vmatpush1.bf16.msra.mxu0 %v238
    %258 = vmatprep.subr.bf16.mxu0 0
    %259 = vmatpush1.bf16.msra.mxu0 %v239
    %260 = vmatprep.subr.bf16.mxu0 0
    %261 = vmatpush1.bf16.msra.mxu0 %v240
    %262 = vmatprep.subr.bf16.mxu0 0
    %263 = vmatpush1.bf16.msra.mxu0 %v241
    %264 = vmatprep.subr.bf16.mxu0 0
    %265 = vmatpush1.bf16.msra.mxu0 %v242
    %266 = vmatprep.subr.bf16.mxu0 0
    %267 = vmatpush1.bf16.msra.mxu0 %v243
    %268 = vmatprep.subr.bf16.mxu0 0
    %269 = vmatpush1.bf16.msra.mxu0 0
    %270 = vmatprep.subr.bf16.mxu0 0
    %271 = vmatpush1.bf16.msra.mxu0 0
    %272 = vmatprep.subr.bf16.mxu0 0
    %273 = vmatpush1.bf16.msra.mxu0 0
    %274 = vmatprep.subr.bf16.mxu0 0
    %275 = vmatpush1.bf16.msra.mxu0 0
    %276 = vmatprep.subr.bf16.mxu0 0
    %277 = vmatpush1.bf16.msra.mxu0 0
    %278 = vmatprep.subr.bf16.mxu0 0
    %279 = vmatpush1.bf16.msra.mxu0 0
    %280 = vmatprep.subr.bf16.mxu0 0
    %281 = vmatpush1.bf16.msra.mxu0 0
    %282 = vmatprep.subr.bf16.mxu0 0
    %283 = vmatpush1.bf16.msra.mxu0 0
    %284 = vmatprep.mubr.bf16.mxu0 0
    %285 = vmatmul.mubr.bf16.gmra.mrb[0].mxu0 %v187
    %v286 = vpop.f32.mrb[0].mxu0
    %v287 = vadd.f32 0.0, %v286
    %v288 = vpop.f32.mrb[0].mxu0
    %v289 = vpop.f32.mrb[0].mxu0
    %v290 = vpop.f32.mrb[0].mxu0
    %291 = vdwg.mxu0
    %v292 = vadd.f32 %v186, %v287
    %293 = vst [vmem:[#allocation2] sm:$0xff] %v292
    // Predicated region
    $region38: #{tpu_custom_call.1} parent=1 // pred_check
      %p294 = pneg %p61
    $region39: #{tpu_custom_call.1} parent=1 // pred_check_branch
      %296 = sbr.rel (%p294) target = $region41
    $region40: #{tpu_custom_call.1} parent=1 // pred_region
      %v297 = vld [vmem:[#allocation2] sm:$0xff]
      %298 = vst [vmem:[#allocation9] sm:$0xff] %v297
    $region41: #{tpu_custom_call.1} parent=1 // pred_fallthru
      _
    // Predicated region
    $region42: #{tpu_custom_call.1} parent=1 // pred_check
      _
    $region43: #{tpu_custom_call.1} parent=1 // pred_check_branch
      %300 = sbr.rel (0) target = $region45
    $region44: #{tpu_custom_call.1} parent=1 // pred_region
      %s302 = ssub.s32 128, 128
      %303 = vsyncadd [#allocation5], %s302
      %s305 = sshll.u32 [#allocation9], 4
      %s306 = int_to_ptr.vmem [resolvable:$true] %s305
      %308 = dma.vmem_to_hbm [thread:$0]  %s306, 128, %s5, [#allocation5]
    $region45: #{tpu_custom_call.1} parent=1 // pred_fallthru
      _
    // Predicated region
    $region46: #{tpu_custom_call.1} parent=1 // pred_check
      _
    $region47: #{tpu_custom_call.1} parent=1 // pred_check_branch
      %310 = sbr.rel (0) target = $region49
    $region48: #{tpu_custom_call.1} parent=1 // pred_region
      %311 = dma.done [#allocation5], 128
    $region49: #{tpu_custom_call.1} parent=1 // pred_fallthru
      _
    %312 = vsyncpa [#allocation4], 1
    %313 = vsyncpa [#allocation7], 1
    %314 = vsyncpa [#allocation5], 1

</llo_original>
